<compile_context>
chip_gen: v6e
topology: v6e:2x2x1
jax: 0.10.0
libtpu: 0.0.40
codegen_flags: <defaults>
</compile_context>

<pallas_src>
import functools

import jax
import jax.numpy as jnp
from jax.experimental import pallas as pl
from jax.experimental.pallas import tpu as pltpu


# ---------------------------------------------------------------------------
# Fused multi-step kernel: J^T resident in VMEM, net_r carried in VMEM scratch
# ---------------------------------------------------------------------------

def cann_seq_kernel(r0_ref, jt_ref, iext_ref, u_ref, recsum_ref, r_ref, r_state,
                    *, alpha, beta, k):
    """One CANN_apu forward call per grid step t, with net_r carried across steps."""
    t = pl.program_id(0)

    @pl.when(t == 0)
    def _():
        r_state[...] = r0_ref[...]                            # seed carried state from r0

    jt = jt_ref[...]                                          # [N, N]  (J transposed)
    r_prev = r_state[...].astype(jt.dtype)                    # [1, N]
    # torch's cat(chunk(J, 4) @ r) is just J @ r; the lane-dense row form r @ J^T feeds the
    # MXU with f32 accumulation regardless of jt dtype (bf16 default / f32 exact).
    temp = jnp.dot(r_prev, jt, preferred_element_type=jnp.float32)      # [1, N] f32

    net_u = alpha * (beta * temp) + alpha * iext_ref[0]       # [1, N]
    buf_2 = jnp.square(0.2 * net_u)                           # [1, N]
    rec_sum = jnp.sum(k * buf_2, axis=-1, keepdims=True)      # [1, 1]
    # net_r = buf_2 * (0.04/recSum) / 0.04 == buf_2 / recSum.  Exact scalar divide
    # (pl.reciprocal(approx=True) would not meet tolerance and saves nothing here).
    net_r = buf_2 * (1.0 / rec_sum)                           # [1, N]

    u_ref[0] = net_u
    r_ref[0] = net_r
    # Lane-dense (1,1,128) recSum block: unmasked full-vreg store instead of a masked
    # (1,1) partial store; the wrapper slices out [:, 0, 0].
    recsum_ref[...] = jnp.broadcast_to(rec_sum.reshape(1, 1, 1), recsum_ref.shape)
    r_state[...] = net_r                                      # carry to step t + 1


# ---------------------------------------------------------------------------
# Wrappers
# ---------------------------------------------------------------------------

def cann_apu_prepare_j(J, dtype=jnp.bfloat16):
    """One-time setup (NOT per forward call).

    Pre-transposes J so the in-kernel matvec is the lane-dense row form r @ J^T and casts
    to `dtype`.  The kernel is HBM-bandwidth bound on J (each element used once per step),
    so the bf16 default halves its DMA bytes; the MXU still accumulates in f32.  Pass
    dtype=jnp.float32 for exact-f32 numerics (then use tight tolerances).
    """
    return jnp.transpose(jnp.asarray(J, dtype=jnp.float32)).astype(dtype)


def cann_apu_forward_sequence(iext_seq, j_t, net_r0, *, alpha=1.0, beta=1.0, k=0.005,
                              prcn=15, num_row=8, num_col=16):
    """T fused CANN_apu forward calls (one per frame), carrying net_r between them.

    Equivalent to calling the torch module T times with self.net_r carried across calls
    (each call's prcn-1 internal loop iterations are identical — see module docstring).
    Returns (net_U[T,R,C], net_recSum[T], net_r[T,R,C]); net_r[-1] is the carried state.
    """
    assert prcn >= 2, "prcn < 2 leaves the torch module's outputs undefined"
    n = num_row * num_col
    t_steps = int(iext_seq.shape[0])
    assert iext_seq.shape == (t_steps, num_row, num_col)
    assert j_t.shape == (n, n), "pass j_t = cann_apu_prepare_j(J)"
    assert net_r0.shape == (num_row, num_col)

    iext_rows = iext_seq.reshape(t_steps, 1, n).astype(jnp.float32)
    r0_row = net_r0.reshape(1, n).astype(jnp.float32)

    kernel = functools.partial(cann_seq_kernel, alpha=float(alpha), beta=float(beta),
                               k=float(k))

    j_bytes = int(j_t.size) * j_t.dtype.itemsize
    vec_bytes = 4 * n
    cost = pl.CostEstimate(
        flops=2 * n * n * t_steps,
        transcendentals=0,
        bytes_accessed=j_bytes + vec_bytes * (3 * t_steps + 1) + 512 * t_steps)
    # Explicit VMEM budget: at production size (N=1680) an f32 J is ~11.3 MB, which is
    # tight against v5e's 16 MiB default scoped limit once buffering is counted; harmless
    # at the small test size and on v6e/v7x.
    vmem_limit = int(min(96 * 2 ** 20, max(32 * 2 ** 20, 2 * j_bytes + 8 * 2 ** 20)))

    u_seq, recsum_seq, r_seq = pl.pallas_call(
        kernel,
        grid=(t_steps,),
        in_specs=[
            pl.BlockSpec((1, n), lambda t: (0, 0)),           # net_r0 (resident)
            pl.BlockSpec((n, n), lambda t: (0, 0)),           # J^T: DMA'd once, resident
            pl.BlockSpec((1, 1, n), lambda t: (t, 0, 0)),     # Iext_t (pipelined)
        ],
        out_specs=(
            pl.BlockSpec((1, 1, n), lambda t: (t, 0, 0)),     # net_U_t
            pl.BlockSpec((1, 1, 128), lambda t: (t, 0, 0)),   # net_recSum_t (lane-dense)
            pl.BlockSpec((1, 1, n), lambda t: (t, 0, 0)),     # net_r_t
        ),
        out_shape=(
            jax.ShapeDtypeStruct((t_steps, 1, n), jnp.float32),
            jax.ShapeDtypeStruct((t_steps, 1, 128), jnp.float32),
            jax.ShapeDtypeStruct((t_steps, 1, n), jnp.float32),
        ),
        scratch_shapes=[pltpu.VMEM((1, n), jnp.float32)],     # carried net_r
        compiler_params=pltpu.CompilerParams(
            dimension_semantics=("arbitrary",),               # sequential carry over t
            vmem_limit_bytes=vmem_limit),
        cost_estimate=cost,
    )(r0_row, j_t, iext_rows)

    return (u_seq.reshape(t_steps, num_row, num_col),
            recsum_seq[:, 0, 0],
            r_seq.reshape(t_steps, num_row, num_col))


def _cann_zero_state(net_Iext, *, alpha, k):
    """Post-reset path (net_r == 0): J @ net_r == 0 exactly, so no J / no matmul needed.
    This is a few vregs of VPU work, so plain XLA beats a pallas_call launch + J DMA."""
    net_u = alpha * net_Iext.astype(jnp.float32)
    buf_2 = jnp.square(0.2 * net_u)
    rec_sum = jnp.sum(k * buf_2)
    net_r = buf_2 * (1.0 / rec_sum)
    return net_u, rec_sum, net_r


def cann_apu_forward(net_Iext, *, j_t=None, net_r0=None, alpha=1.0, beta=1.0, k=0.005,
                     prcn=15, num_row=8, num_col=16):
    """Single CANN_apu forward call.

    net_r0=None means "just after reset()" (net_r == zeros): the recurrent term is exactly
    zero so the whole J matvec is skipped.  For a non-zero carried state pass net_r0 and
    j_t = cann_apu_prepare_j(J); for a sequence of frames prefer
    cann_apu_forward_sequence, which keeps J resident in VMEM across the steps.
    """
    assert prcn >= 2, "prcn < 2 leaves the torch module's outputs undefined"
    assert net_Iext.shape == (num_row, num_col)
    if net_r0 is None:
        return _cann_zero_state(net_Iext, alpha=float(alpha), k=float(k))
    u_seq, s_seq, r_seq = cann_apu_forward_sequence(
        net_Iext[None], j_t, net_r0, alpha=alpha, beta=beta, k=k, prcn=prcn,
        num_row=num_row, num_col=num_col)
    return u_seq[0], s_seq[0], r_seq[0]


# ---------------------------------------------------------------------------
# Pure-JAX references
# ---------------------------------------------------------------------------

def cann_apu_reference_forward(J, net_Iext, net_r0, *, alpha=1.0, beta=1.0, k=0.005,
                               prcn=15, num_row=8, num_col=16):
    """Line-by-line mirror of the torch forward (including the prcn loop and chunk/cat)."""
    n = num_row * num_col
    self_net_r = net_r0
    net_u = rec_sum = net_r = None
    for _ in range(1, prcn):
        net_r = self_net_r                       # self.net_r is never written in the loop
        buf_1 = net_r.reshape(n, 1)
        chunks = jnp.array_split(J, 4, axis=0)   # torch.chunk(J, 4, dim=0)
        buf_1 = jnp.concatenate([c @ buf_1 for c in chunks], axis=0)
        temp = buf_1.reshape(num_row, num_col)
        net_u = alpha * (beta * temp) + alpha * net_Iext
        buf_2 = jnp.square(0.2 * net_u.reshape(n, 1))
        rec_sum = jnp.sum(k * buf_2)
        buf_3 = 0.04 / rec_sum
        net_r = jnp.square(0.2 * net_u) * buf_3 / 0.04
    return net_u, rec_sum, net_r


def _emulated_step(j_t, net_Iext, net_r_prev, *, alpha=1.0, beta=1.0, k=0.005,
                   num_row=8, num_col=16):
    """Pure-JAX mirror of ONE kernel step with the identical dtype casts (bf16 J + f32 MXU
    accumulation); used to validate the reduced-precision path teacher-forced on the
    kernel's own previous-step output (no chaotic error compounding)."""
    n = num_row * num_col
    r_row = net_r_prev.reshape(1, n).astype(jnp.float32).astype(j_t.dtype)
    temp = jnp.dot(r_row, j_t, preferred_element_type=jnp.float32)
    net_u = alpha * (beta * temp) + alpha * net_Iext.reshape(1, n).astype(jnp.float32)
    buf_2 = jnp.square(0.2 * net_u)
    rec_sum = jnp.sum(k * buf_2)
    net_r = buf_2 * (1.0 / rec_sum)
    return (net_u.reshape(num_row, num_col), rec_sum, net_r.reshape(num_row, num_col))


# ---------------------------------------------------------------------------
# Self-test
# ---------------------------------------------------------------------------

if __name__ == "__main__":
    NUM_ROW, NUM_COL = 8, 16             # small test shapes (module default is 30x56)
    N = NUM_ROW * NUM_COL
    T = 5                                # frames fused into one pallas_call
    K = 0.005
    PRCN = 15

    key = jax.random.PRNGKey(0)
    kj, kx, kr = jax.random.split(key, 3)
    J = jax.random.normal(kj, (N, N), dtype=jnp.float32) * 0.05
    iext_seq = jax.random.normal(kx, (T, NUM_ROW, NUM_COL), dtype=jnp.float32)
    net_r0 = jax.random.uniform(kr, (NUM_ROW, NUM_COL), dtype=jnp.float32)
    zeros_state = jnp.zeros((NUM_ROW, NUM_COL), jnp.float32)

    j_t_bf16 = cann_apu_prepare_j(J)                        # perf default: bf16 J^T
    j_t_f32 = cann_apu_prepare_j(J, dtype=jnp.float32)      # exact-f32 variant

    # --- 1) post-reset path (net_r == 0): plain-XLA fast path, exact numerics ----------
    u1, s1, r1 = cann_apu_forward(iext_seq[0], k=K, prcn=PRCN,
                                  num_row=NUM_ROW, num_col=NUM_COL)
    jax.block_until_ready((u1, s1, r1))
    ref_u0, ref_s0, ref_r0 = cann_apu_reference_forward(
        J, iext_seq[0], zeros_state, k=K, prcn=PRCN, num_row=NUM_ROW, num_col=NUM_COL)
    assert jnp.allclose(u1, ref_u0, rtol=1e-5, atol=1e-5)
    assert jnp.allclose(s1, ref_s0, rtol=1e-5, atol=1e-5)
    assert jnp.allclose(r1, ref_r0, rtol=1e-5, atol=1e-5)

    # --- 2) Pallas kernel, single step, zero state (matvec contributes exactly 0) ------
    u2, s2, r2 = cann_apu_forward(iext_seq[0], j_t=j_t_bf16, net_r0=zeros_state,
                                  k=K, prcn=PRCN, num_row=NUM_ROW, num_col=NUM_COL)
    jax.block_until_ready((u2, s2, r2))
    assert jnp.allclose(u2, ref_u0, rtol=1e-5, atol=1e-5)
    assert jnp.allclose(s2, ref_s0, rtol=1e-5, atol=1e-5)
    assert jnp.allclose(r2, ref_r0, rtol=1e-5, atol=1e-5)

    # --- 3) fused T-step sequence kernel (bf16 J^T resident in VMEM, carried net_r) ----
    u3, s3, r3 = cann_apu_forward_sequence(iext_seq, j_t_bf16, net_r0, k=K, prcn=PRCN,
                                           num_row=NUM_ROW, num_col=NUM_COL)
    jax.block_until_ready((u3, s3, r3))
    # Teacher-forced per-step check: recompute step t from the kernel's own r_{t-1} with
    # identical casts; isolates per-step numerics while still catching carry/index bugs.
    r_prev = net_r0
    for t in range(T):
        eu, es, er = _emulated_step(j_t_bf16, iext_seq[t], r_prev, k=K,
                                    num_row=NUM_ROW, num_col=NUM_COL)
        assert jnp.allclose(u3[t], eu, rtol=5e-4, atol=5e-4), f"U mismatch at step {t}"
        assert jnp.allclose(s3[t], es, rtol=5e-4, atol=5e-4), f"recSum mismatch at step {t}"
        assert jnp.allclose(r3[t], er, rtol=5e-4, atol=5e-4), f"r mismatch at step {t}"
        r_prev = r3[t]

    # --- 4) exact-f32 J variant, single step, non-zero state, vs torch-mirroring ref ---
    u4, s4, r4 = cann_apu_forward(iext_seq[0], j_t=j_t_f32, net_r0=net_r0, k=K,
                                  prcn=PRCN, num_row=NUM_ROW, num_col=NUM_COL)
    jax.block_until_ready((u4, s4, r4))
    ref_u4, ref_s4, ref_r4 = cann_apu_reference_forward(
        J, iext_seq[0], net_r0, k=K, prcn=PRCN, num_row=NUM_ROW, num_col=NUM_COL)
    assert jnp.allclose(u4, ref_u4, rtol=5e-2, atol=5e-2)
    assert jnp.allclose(s4, ref_s4, rtol=5e-2, atol=5e-2)
    assert jnp.allclose(r4, ref_r4, rtol=5e-2, atol=5e-2)

    print("KERNEL_OK")
</pallas_src>

<mosaic_0001>
module attributes {stable_mosaic.version = 11 : i64} {
  func.func @cann_seq_kernel(%arg0: i32, %arg1: memref<1x128xf32, #tpu.memory_space<vmem>>, %arg2: memref<128x128xbf16, #tpu.memory_space<vmem>>, %arg3: memref<1x1x128xf32, #tpu.memory_space<vmem>>, %arg4: memref<1x1x128xf32, #tpu.memory_space<vmem>>, %arg5: memref<1x1x128xf32, #tpu.memory_space<vmem>>, %arg6: memref<1x1x128xf32, #tpu.memory_space<vmem>>, %arg7: memref<1x128xf32, #tpu.memory_space<vmem>>) attributes {dimension_semantics = [#tpu.dimension_semantics<arbitrary>], iteration_bounds = array<i64: 1>, scalar_prefetch = 0 : i64, scratch_operands = 1 : i64, tpu.core_type = #tpu.core_type<tc>, window_params = [{pipeline_mode = #tpu.pipeline_mode<synchronous>, transform_indices = @transform_0, window_bounds = array<i64: 1, 128>}, {pipeline_mode = #tpu.pipeline_mode<synchronous>, transform_indices = @transform_1, window_bounds = array<i64: 128, 128>}, {transform_indices = @transform_2, window_bounds = array<i64: 1, 1, 128>}, {transform_indices = @transform_3, window_bounds = array<i64: 1, 1, 128>}, {transform_indices = @transform_4, window_bounds = array<i64: 1, 1, 128>}, {transform_indices = @transform_5, window_bounds = array<i64: 1, 1, 128>}]} {
    %c0_i32 = arith.constant 0 : i32
    %0 = arith.cmpi eq, %arg0, %c0_i32 : i32
    %1 = arith.extui %0 : i1 to i32
    %c0_i32_0 = arith.constant 0 : i32
    %2 = arith.cmpi ne, %1, %c0_i32_0 : i32
    scf.if %2 {
      %c0_25 = arith.constant 0 : index
      %c0_26 = arith.constant 0 : index
      %38 = vector.load %arg1[%c0_25, %c0_26] : memref<1x128xf32, #tpu.memory_space<vmem>>, vector<1x128xf32>
      %c0_27 = arith.constant 0 : index
      %c0_28 = arith.constant 0 : index
      %39 = vector.load %arg7[%c0_27, %c0_28] : memref<1x128xf32, #tpu.memory_space<vmem>>, vector<1x128xf32>
      tpu.vector_store %arg7[%c0_27, %c0_28], %38 {strides = array<i32>} : memref<1x128xf32, #tpu.memory_space<vmem>>, vector<1x128xf32>,
    } else {
    }
    %c0 = arith.constant 0 : index
    %c0_1 = arith.constant 0 : index
    %3 = vector.load %arg2[%c0, %c0_1] : memref<128x128xbf16, #tpu.memory_space<vmem>>, vector<128x128xbf16>
    %c0_2 = arith.constant 0 : index
    %c0_3 = arith.constant 0 : index
    %4 = vector.load %arg7[%c0_2, %c0_3] : memref<1x128xf32, #tpu.memory_space<vmem>>, vector<1x128xf32>
    %5 = arith.truncf %4 : vector<1x128xf32> to vector<1x128xbf16>
    %cst = arith.constant dense<0.000000e+00> : vector<1x128xf32>
    %6 = tpu.matmul %5, %3, %cst {dimension_numbers = #tpu.dot_dimension_numbers<[1], [0], [0], [1], [0, 0, 1, 1], [], []>} : vector<1x128xbf16>, vector<128x128xbf16>, vector<1x128xf32> -> vector<1x128xf32>
    %cst_4 = arith.constant 1.000000e+00 : f32
    %7 = vector.broadcast %cst_4 : f32 to vector<1x128xf32>
    %8 = arith.mulf %7, %6 : vector<1x128xf32>
    %cst_5 = arith.constant 1.000000e+00 : f32
    %9 = vector.broadcast %cst_5 : f32 to vector<1x128xf32>
    %10 = arith.mulf %9, %8 : vector<1x128xf32>
    %c0_6 = arith.constant 0 : index
    %c0_7 = arith.constant 0 : index
    %c0_8 = arith.constant 0 : index
    %11 = vector.load %arg3[%c0_6, %c0_7, %c0_8] : memref<1x1x128xf32, #tpu.memory_space<vmem>>, vector<1x1x128xf32>
    %12 = vector.shape_cast %11 : vector<1x1x128xf32> to vector<1x128xf32>
    %cst_9 = arith.constant 1.000000e+00 : f32
    %13 = vector.broadcast %cst_9 : f32 to vector<1x128xf32>
    %14 = arith.mulf %13, %12 : vector<1x128xf32>
    %15 = arith.addf %10, %14 : vector<1x128xf32>
    %cst_10 = arith.constant 2.000000e-01 : f32
    %16 = vector.broadcast %cst_10 : f32 to vector<1x128xf32>
    %17 = arith.mulf %16, %15 : vector<1x128xf32>
    %18 = arith.mulf %17, %17 : vector<1x128xf32>
    %cst_11 = arith.constant 5.000000e-03 : f32
    %19 = vector.broadcast %cst_11 : f32 to vector<1x128xf32>
    %20 = arith.mulf %19, %18 : vector<1x128xf32>
    %cst_12 = arith.constant dense<0.000000e+00> : vector<1xf32>
    %21 = vector.multi_reduction <add>, %20, %cst_12 [1] : vector<1x128xf32> to vector<1xf32>
    %22 = vector.shape_cast %21 : vector<1xf32> to vector<1x1xf32>
    %cst_13 = arith.constant 1.000000e+00 : f32
    %23 = vector.broadcast %cst_13 : f32 to vector<1x1xf32>
    %24 = arith.divf %23, %22 : vector<1x1xf32>
    %25 = vector.broadcast %24 : vector<1x1xf32> to vector<1x128xf32>
    %26 = arith.mulf %18, %25 : vector<1x128xf32>
    %c0_14 = arith.constant 0 : index
    %c0_15 = arith.constant 0 : index
    %c0_16 = arith.constant 0 : index
    %27 = vector.load %arg4[%c0_14, %c0_15, %c0_16] : memref<1x1x128xf32, #tpu.memory_space<vmem>>, vector<1x1x128xf32>
    %28 = vector.shape_cast %27 : vector<1x1x128xf32> to vector<1x128xf32>
    %29 = vector.shape_cast %15 : vector<1x128xf32> to vector<1x1x128xf32>
    tpu.vector_store %arg4[%c0_14, %c0_15, %c0_16], %29 {strides = array<i32>} : memref<1x1x128xf32, #tpu.memory_space<vmem>>, vector<1x1x128xf32>,
    %c0_17 = arith.constant 0 : index
    %c0_18 = arith.constant 0 : index
    %c0_19 = arith.constant 0 : index
    %30 = vector.load %arg6[%c0_17, %c0_18, %c0_19] : memref<1x1x128xf32, #tpu.memory_space<vmem>>, vector<1x1x128xf32>
    %31 = vector.shape_cast %30 : vector<1x1x128xf32> to vector<1x128xf32>
    %32 = vector.shape_cast %26 : vector<1x128xf32> to vector<1x1x128xf32>
    tpu.vector_store %arg6[%c0_17, %c0_18, %c0_19], %32 {strides = array<i32>} : memref<1x1x128xf32, #tpu.memory_space<vmem>>, vector<1x1x128xf32>,
    %33 = vector.shape_cast %22 : vector<1x1xf32> to vector<1x1x1xf32>
    %34 = vector.shape_cast %33 : vector<1x1x1xf32> to vector<1x1x1xf32>
    %35 = vector.broadcast %34 : vector<1x1x1xf32> to vector<1x1x128xf32>
    %c0_20 = arith.constant 0 : index
    %c0_21 = arith.constant 0 : index
    %c0_22 = arith.constant 0 : index
    %36 = vector.load %arg5[%c0_20, %c0_21, %c0_22] : memref<1x1x128xf32, #tpu.memory_space<vmem>>, vector<1x1x128xf32>
    tpu.vector_store %arg5[%c0_20, %c0_21, %c0_22], %35 {strides = array<i32>} : memref<1x1x128xf32, #tpu.memory_space<vmem>>, vector<1x1x128xf32>,
    %c0_23 = arith.constant 0 : index
    %c0_24 = arith.constant 0 : index
    %37 = vector.load %arg7[%c0_23, %c0_24] : memref<1x128xf32, #tpu.memory_space<vmem>>, vector<1x128xf32>
    tpu.vector_store %arg7[%c0_23, %c0_24], %26 {strides = array<i32>} : memref<1x128xf32, #tpu.memory_space<vmem>>, vector<1x128xf32>,
    return
  }
  func.func @transform_0(%arg0: i32) -> (i32, i32) {
    %c0_i32 = arith.constant 0 : i32
    %c0_i32_0 = arith.constant 0 : i32
    %c0_i32_1 = arith.constant 0 : i32
    return %c0_i32, %c0_i32_0 : i32, i32
  }
  func.func @transform_1(%arg0: i32) -> (i32, i32) {
    %c0_i32 = arith.constant 0 : i32
    %c0_i32_0 = arith.constant 0 : i32
    %c0_i32_1 = arith.constant 0 : i32
    return %c0_i32, %c0_i32_0 : i32, i32
  }
  func.func @transform_2(%arg0: i32) -> (i32, i32, i32) {
    %c0_i32 = arith.constant 0 : i32
    %c0_i32_0 = arith.constant 0 : i32
    %c0_i32_1 = arith.constant 0 : i32
    return %arg0, %c0_i32, %c0_i32_0 : i32, i32, i32
  }
  func.func @transform_3(%arg0: i32) -> (i32, i32, i32) {
    %c0_i32 = arith.constant 0 : i32
    %c0_i32_0 = arith.constant 0 : i32
    %c0_i32_1 = arith.constant 0 : i32
    return %arg0, %c0_i32, %c0_i32_0 : i32, i32, i32
  }
  func.func @transform_4(%arg0: i32) -> (i32, i32, i32) {
    %c0_i32 = arith.constant 0 : i32
    %c0_i32_0 = arith.constant 0 : i32
    %c0_i32_1 = arith.constant 0 : i32
    return %arg0, %c0_i32, %c0_i32_0 : i32, i32, i32
  }
  func.func @transform_5(%arg0: i32) -> (i32, i32, i32) {
    %c0_i32 = arith.constant 0 : i32
    %c0_i32_0 = arith.constant 0 : i32
    %c0_i32_1 = arith.constant 0 : i32
    return %arg0, %c0_i32, %c0_i32_0 : i32, i32, i32
  }
}

</mosaic_0001>

<llo_original>
// kernel: tpu_custom_call.1
$region0: #{tpu_custom_call.1}
  #allocation0 [shape = 'u32[]', space=smem, size = 0x4, offset = 0x4, fixed_abs, tag = 'smem constant byte address 0x4 - core index']
  #allocation1 [shape = 'u32[144,128]{1,0:T(1,128)}', space=vmem, size = 0x12000, scoped, tag = 'internal scratch']
  #allocation2 [shape = 'f32[1,128]{1,0:T(1,128)}', space=vmem, size = 0x200, scoped, tag = 'scratch operand']
  %s0 = inlined_call_operand.hbm [shape: f32[1,128], index: 0, kind: input, shape index: {}]
  %s1 = inlined_call_operand.hbm [shape: bf16[128,128], index: 1, kind: input, shape index: {}]
  %s2 = inlined_call_operand.vmem [shape: f32[1,1,128], index: 2, kind: input, shape index: {}]
  %s3 = inlined_call_operand.hbm [shape: f32[1,1,128], index: 3, kind: output, shape index: {0}]
  %s4 = inlined_call_operand.hbm [shape: f32[1,1,128], index: 4, kind: output, shape index: {1}]
  %s5 = inlined_call_operand.hbm [shape: f32[1,1,128], index: 5, kind: output, shape index: {2}]
  %6 = xla_tuple %s3, %s4, %s5
  %s7 = sld [smem:[#allocation0]]
  $region50: #{tpu_custom_call.1} parent=0
    _
  %s9 = ssub.s32 1, %s7
  %s10 = scalar_select 0, %s9, %s7
  $region1: #{tpu_custom_call.1} parent=0
    #allocation3 [shape = 'u8[512]{0}', space=vmem, size = 0x400, scoped, tag = 'input window, operand 0, single buffered']
    #allocation4 [shape = 's32[1]{0}', space=sflag, size = 0x4, scoped, tag = 'scoped memory for tpu_custom_call.1']
    #allocation5 [shape = 's32[1]{0}', space=sflag, size = 0x4, scoped, tag = 'scoped memory for tpu_custom_call.1']
    #allocation6 [shape = 'u8[32768]{0}', space=vmem, size = 0x8000, scoped, tag = 'input window, operand 1, single buffered']
    #allocation7 [shape = 's32[1]{0}', space=sflag, size = 0x4, scoped, tag = 'scoped memory for tpu_custom_call.1']
    #allocation8 [shape = 'u8[512]{0}', space=vmem, size = 0x400, scoped, tag = 'output window, operand 0, single buffered']
    #allocation9 [shape = 'u8[512]{0}', space=vmem, size = 0x400, scoped, tag = 'output window, operand 1, single buffered']
    #allocation10 [shape = 's32[1]{0}', space=sflag, size = 0x4, scoped, tag = 'scoped memory for tpu_custom_call.1']
    #allocation11 [shape = 'u8[512]{0}', space=vmem, size = 0x400, scoped, tag = 'output window, operand 2, single buffered']
    %11 = vsyncpa [#allocation4], 0
    %12 = vsyncpa [#allocation7], 0
    %13 = vsyncpa [#allocation5], 0
    %14 = vsyncpa [#allocation10], 0
    // Predicated region
    $region2: #{tpu_custom_call.1} parent=1 // pred_check
      _
    $region3: #{tpu_custom_call.1} parent=1 // pred_check_branch
      %16 = sbr.rel (0) target = $region5
    $region4: #{tpu_custom_call.1} parent=1 // pred_region
      %s18 = ssub.s32 16, 16
      %19 = vsyncadd [#allocation4], %s18
      %s21 = sshll.u32 [#allocation3], 4
      %s22 = int_to_ptr.vmem [resolvable:$true] %s21
      %24 = dma.hbm_to_vmem [thread:$0]  %s0, 16, %s22, [#allocation4]
    $region5: #{tpu_custom_call.1} parent=1 // pred_fallthru
      _
    // Predicated region
    $region6: #{tpu_custom_call.1} parent=1 // pred_check
      _
    $region7: #{tpu_custom_call.1} parent=1 // pred_check_branch
      %26 = sbr.rel (0) target = $region9
    $region8: #{tpu_custom_call.1} parent=1 // pred_region
      %s28 = ssub.s32 1024, 1024
      %29 = vsyncadd [#allocation7], %s28
      %s30 = sshll.u32 [#allocation6], 4
      %s31 = int_to_ptr.vmem [resolvable:$true] %s30
      %36 = dma.hbm_to_vmem [thread:$0]  %s1, 1024, %s31, [#allocation7], 64, 64, 4
    $region9: #{tpu_custom_call.1} parent=1 // pred_fallthru
      _
    // Predicated region
    $region10: #{tpu_custom_call.1} parent=1 // pred_check
      _
    $region11: #{tpu_custom_call.1} parent=1 // pred_check_branch
      %38 = sbr.rel (0) target = $region13
    $region12: #{tpu_custom_call.1} parent=1 // pred_region
      _
    $region13: #{tpu_custom_call.1} parent=1 // pred_fallthru
      _
    // Predicated region
    $region14: #{tpu_custom_call.1} parent=1 // pred_check
      _
    $region15: #{tpu_custom_call.1} parent=1 // pred_check_branch
      %40 = sbr.rel (0) target = $region17
    $region16: #{tpu_custom_call.1} parent=1 // pred_region
      %41 = dma.done [#allocation4], 16
    $region17: #{tpu_custom_call.1} parent=1 // pred_fallthru
      _
    // Predicated region
    $region18: #{tpu_custom_call.1} parent=1 // pred_check
      _
    $region19: #{tpu_custom_call.1} parent=1 // pred_check_branch
      %43 = sbr.rel (0) target = $region21
    $region20: #{tpu_custom_call.1} parent=1 // pred_region
      %44 = dma.done [#allocation7], 1024
    $region21: #{tpu_custom_call.1} parent=1 // pred_fallthru
      _
    %p46 = scmp.eq.s32.totalorder 0, 0
    // Predicated region
    $region22: #{tpu_custom_call.1} parent=1 // pred_check
      %p47 = pneg %p46
    $region23: #{tpu_custom_call.1} parent=1 // pred_check_branch
      %49 = sbr.rel (%p47) target = $region25
    $region24: #{tpu_custom_call.1} parent=1 // pred_region
      %v50 = vld [vmem:[#allocation3] sm:$0x1]
      %51 = vst [vmem:[#allocation2] sm:$0x1] %v50
    $region25: #{tpu_custom_call.1} parent=1 // pred_fallthru
      _
    %v52 = vld [vmem:[#allocation6] sm:$0xf]
    %v53 = vld [vmem:[#allocation6 + $0x4] sm:$0xf]
    %v54 = vld [vmem:[#allocation6 + $0x8] sm:$0xf]
    %v55 = vld [vmem:[#allocation6 + $0xc] sm:$0xf]
    %v56 = vld [vmem:[#allocation6 + $0x10] sm:$0xf]
    %v57 = vld [vmem:[#allocation6 + $0x14] sm:$0xf]
    %v58 = vld [vmem:[#allocation6 + $0x18] sm:$0xf]
    %v59 = vld [vmem:[#allocation6 + $0x1c] sm:$0xf]
    %v60 = vld [vmem:[#allocation6 + $0x20] sm:$0xf]
    %v61 = vld [vmem:[#allocation6 + $0x24] sm:$0xf]
    %v62 = vld [vmem:[#allocation6 + $0x28] sm:$0xf]
    %v63 = vld [vmem:[#allocation6 + $0x2c] sm:$0xf]
    %v64 = vld [vmem:[#allocation6 + $0x30] sm:$0xf]
    %v65 = vld [vmem:[#allocation6 + $0x34] sm:$0xf]
    %v66 = vld [vmem:[#allocation6 + $0x38] sm:$0xf]
    %v67 = vld [vmem:[#allocation6 + $0x3c] sm:$0xf]
    %v68 = vld [vmem:[#allocation2] sm:$0x1]
    %v69 = vpack.c.bf16 %v68, %v68
    %v70 = vld [vmem:[%s2] sm:$0x1]
    %v87 = vunpack.c.l.b16 %v52
    %v88 = vunpack.c.l.b16 %v53
    %v89 = vunpack.c.l.b16 %v54
    %v90 = vunpack.c.l.b16 %v55
    %v91 = vunpack.c.l.b16 %v56
    %v92 = vunpack.c.l.b16 %v57
    %v93 = vunpack.c.l.b16 %v58
    %v94 = vunpack.c.l.b16 %v59
    %v95 = vunpack.c.l.b16 %v60
    %v96 = vunpack.c.l.b16 %v61
    %v97 = vunpack.c.l.b16 %v62
    %v98 = vunpack.c.l.b16 %v63
    %v99 = vunpack.c.l.b16 %v64
    %v100 = vunpack.c.l.b16 %v65
    %v101 = vunpack.c.l.b16 %v66
    %v102 = vunpack.c.l.b16 %v67
    %v103 = vpack.c.b16 %v88, %v87
    %v104 = vpack.c.b16 %v90, %v89
    %v105 = vpack.c.b16 %v92, %v91
    %v106 = vpack.c.b16 %v94, %v93
    %v107 = vpack.c.b16 %v96, %v95
    %v108 = vpack.c.b16 %v98, %v97
    %v109 = vpack.c.b16 %v100, %v99
    %v110 = vpack.c.b16 %v102, %v101
    %119 = vmatprep.subr.bf16.mxu0 0
    %120 = vmatpush1.bf16.msra.mxu0 %v110
    %121 = vmatprep.subr.bf16.mxu0 0
    %122 = vmatpush1.bf16.msra.mxu0 %v109
    %123 = vmatprep.subr.bf16.mxu0 0
    %124 = vmatpush1.bf16.msra.mxu0 %v108
    %125 = vmatprep.subr.bf16.mxu0 0
    %126 = vmatpush1.bf16.msra.mxu0 %v107
    %127 = vmatprep.subr.bf16.mxu0 0
    %128 = vmatpush1.bf16.msra.mxu0 %v106
    %129 = vmatprep.subr.bf16.mxu0 0
    %130 = vmatpush1.bf16.msra.mxu0 %v105
    %131 = vmatprep.subr.bf16.mxu0 0
    %132 = vmatpush1.bf16.msra.mxu0 %v104
    %133 = vmatprep.subr.bf16.mxu0 0
    %134 = vmatpush1.bf16.msra.mxu0 %v103
    %135 = vmatprep.subr.bf16.mxu0 0
    %136 = vmatpush2.bf16.msra.mxu0 0
    %137 = vmatprep.subr.bf16.mxu0 0
    %138 = vmatpush2.bf16.msra.mxu0 0
    %139 = vmatprep.subr.bf16.mxu0 0
    %140 = vmatpush2.bf16.msra.mxu0 0
    %141 = vmatprep.subr.bf16.mxu0 0
    %142 = vmatpush2.bf16.msra.mxu0 0
    %143 = vmatprep.subr.bf16.mxu0 0
    %144 = vmatpush2.bf16.msra.mxu0 0
    %145 = vmatprep.subr.bf16.mxu0 0
    %146 = vmatpush2.bf16.msra.mxu0 0
    %147 = vmatprep.subr.bf16.mxu0 0
    %148 = vmatpush2.bf16.msra.mxu0 0
    %149 = vmatprep.subr.bf16.mxu0 0
    %150 = vmatpush2.bf16.msra.mxu0 0
    %151 = vmatprep.mubr.bf16.mxu0 0
    %152 = vmatmul.mubr.bf16.gmra.mxu0 %v69
    %v153 = vpop.f32.mrf.mxu0
    %v154 = vadd.f32 %v70, %v153
    %v155 = vpop.f32.mrf.mxu0
    %v156 = vpop.f32.mrf.mxu0
    %v157 = vpop.f32.mrf.mxu0
    %158 = vdwg.mxu0
    %v159 = vmul.f32 %v154, 0.2
    %v160 = vmul.f32 %v159, %v159
    %v161 = vmul.f32 %v160, 0.005
    %vm162 = vcmask 1040384
    %v163 = vsel %vm162, %v161, 0.0
    %164 = vadd.xlane.f32.xlu0 %v163
    %v165 = vpop.xlane.xlu0 %164
    %v166 = vrcp.pop %v165
    %v167 = vmul.f32 1.0, %v166
    %v168 = vmul.f32 %v160, %v167
    %169 = vst [vmem:[#allocation8] sm:$0x1] %v154
    %170 = vst [vmem:[#allocation11] sm:$0x1] %v168
    %171 = vst [vmem:[#allocation9] sm:$0x1] %v165
    %172 = vst [vmem:[#allocation2] sm:$0x1] %v168
    // Predicated region
    $region26: #{tpu_custom_call.1} parent=1 // pred_check
      _
    $region27: #{tpu_custom_call.1} parent=1 // pred_check_branch
      %174 = sbr.rel (0) target = $region29
    $region28: #{tpu_custom_call.1} parent=1 // pred_region
      %s176 = ssub.s32 16, 16
      %177 = vsyncadd [#allocation5], %s176
      %s179 = sshll.u32 [#allocation8], 4
      %s180 = int_to_ptr.vmem [resolvable:$true] %s179
      %182 = dma.vmem_to_hbm [thread:$0]  %s180, 16, %s3, [#allocation5]
    $region29: #{tpu_custom_call.1} parent=1 // pred_fallthru
      _
    // Predicated region
    $region30: #{tpu_custom_call.1} parent=1 // pred_check
      _
    $region31: #{tpu_custom_call.1} parent=1 // pred_check_branch
      %184 = sbr.rel (0) target = $region33
    $region32: #{tpu_custom_call.1} parent=1 // pred_region
      %s186 = ssub.s32 16, 16
      %187 = vsyncadd [#allocation10], %s186
      %s189 = sshll.u32 [#allocation9], 4
      %s190 = int_to_ptr.vmem [resolvable:$true] %s189
      %192 = dma.vmem_to_hbm [thread:$0]  %s190, 16, %s4, [#allocation10]
    $region33: #{tpu_custom_call.1} parent=1 // pred_fallthru
      _
    // Predicated region
    $region34: #{tpu_custom_call.1} parent=1 // pred_check
      _
    $region35: #{tpu_custom_call.1} parent=1 // pred_check_branch
      %194 = sbr.rel (0) target = $region37
    $region36: #{tpu_custom_call.1} parent=1 // pred_region
      %s196 = ssub.s32 16, 16
      %197 = vsyncadd [#allocation10], %s196
      %s199 = sshll.u32 [#allocation11], 4
      %s200 = int_to_ptr.vmem [resolvable:$true] %s199
      %202 = dma.vmem_to_hbm [thread:$0]  %s200, 16, %s5, [#allocation10]
    $region37: #{tpu_custom_call.1} parent=1 // pred_fallthru
      _
    // Predicated region
    $region38: #{tpu_custom_call.1} parent=1 // pred_check
      _
    $region39: #{tpu_custom_call.1} parent=1 // pred_check_branch
      %204 = sbr.rel (0) target = $region41
    $region40: #{tpu_custom_call.1} parent=1 // pred_region
      %205 = dma.done [#allocation5], 16
    $region41: #{tpu_custom_call.1} parent=1 // pred_fallthru
      _
    // Predicated region
    $region42: #{tpu_custom_call.1} parent=1 // pred_check
      _
    $region43: #{tpu_custom_call.1} parent=1 // pred_check_branch
      %207 = sbr.rel (0) target = $region45
    $region44: #{tpu_custom_call.1} parent=1 // pred_region
      %208 = dma.done [#allocation10], 16
    $region45: #{tpu_custom_call.1} parent=1 // pred_fallthru
      _
    // Predicated region
    $region46: #{tpu_custom_call.1} parent=1 // pred_check
      _
    $region47: #{tpu_custom_call.1} parent=1 // pred_check_branch
      %210 = sbr.rel (0) target = $region49
    $region48: #{tpu_custom_call.1} parent=1 // pred_region
      %211 = dma.done [#allocation10], 16
    $region49: #{tpu_custom_call.1} parent=1 // pred_fallthru
      _
    %212 = vsyncpa [#allocation4], 1
    %213 = vsyncpa [#allocation7], 1
    %214 = vsyncpa [#allocation5], 1
    %215 = vsyncpa [#allocation10], 1

</llo_original>
